<compile_context>
chip_gen: v5e
topology: v5e:2x2
jax: 0.10.0
libtpu: 0.0.40
codegen_flags: <defaults>
</compile_context>

<pallas_src>
import jax
import jax.numpy as jnp
from jax import lax
from jax.experimental import pallas as pl
from jax.experimental.pallas import tpu as pltpu

# ---- problem sizes (from the PyTorch module) -------------------------------
N, C_IN, H, W = 6, 10, 8, 8
C_OUT, K, STRIDE, PAD, OUT_PAD = 20, 3, 2, 1, 1

H_OUT = (H - 1) * STRIDE - 2 * PAD + K + OUT_PAD          # 16
W_OUT = (W - 1) * STRIDE - 2 * PAD + K + OUT_PAD          # 16
PAD_LO = K - 1 - PAD                                       # 1
PAD_HI = K - 1 - PAD + OUT_PAD                             # 2
H_UP = (H - 1) * STRIDE + 1                                # 15
W_UP = (W - 1) * STRIDE + 1                                # 15
H_PAD = H_UP + PAD_LO + PAD_HI                             # 18
W_PAD = W_UP + PAD_LO + PAD_HI                             # 18

NEG_SLOPE = 0.67
SPATIAL = H_OUT * W_OUT                                    # 256 (2 lane tiles)
KKC = K * K * C_IN                                         # 90


def _num_grid_steps() -> int:
    """2 parallel steps (one per TensorCore) on v7x; 1 step on single-TC chips."""
    try:
        kind = jax.devices()[0].device_kind.lower()
    except Exception:
        return 1
    return 2 if ("v7" in kind or "7x" in kind) else 1


N_STEPS = _num_grid_steps()     # 1 on v5e/v6e, 2 on v7x
B_BLK = N // N_STEPS            # images per grid step (6 or 3)
BLK_COLS = B_BLK * SPATIAL      # 1536 or 768 -- lane-dense (multiple of 128)


# ---- Pallas kernel: one MXU contraction + bias + leaky + lane-dense store ---
def convt_kernel(w_ref, b_ref, p_ref, o_ref):
    # w_ref : (C_OUT, KKC)            im2col weights (flipped kernel)
    # b_ref : (C_OUT, 1)              bias
    # p_ref : (KKC, BLK_COLS)         lane-dense im2col patches for B_BLK images
    # o_ref : (B_BLK, C_OUT, SPATIAL) NCHW-flat output, lane-dense
    acc = jnp.dot(w_ref[...], p_ref[...],
                  preferred_element_type=jnp.float32)       # (C_OUT, BLK_COLS)
    acc = acc + b_ref[...]                                   # (C_OUT,1) broadcast
    acc = jnp.maximum(acc, NEG_SLOPE * acc)                  # leaky where (0<slope<1)

    # Store one (C_OUT, 256) slab per image: lane offsets are multiples of 256,
    # so these are aligned, unmasked vector stores.
    for b in range(B_BLK):
        o_ref[b] = acc[:, b * SPATIAL:(b + 1) * SPATIAL]


@jax.jit
def conv_transpose_leaky(x_nchw, w_torch, bias):
    """x_nchw: (N, C_IN, H, W); w_torch: (C_IN, C_OUT, K, K); bias: (C_OUT,)."""
    x = jnp.transpose(x_nchw, (0, 2, 3, 1)).astype(jnp.float32)   # NHWC

    # zero-upsample (fractional stride) + transposed-conv padding (fused by XLA)
    x_up = jnp.zeros((N, H_UP, W_UP, C_IN), jnp.float32)
    x_up = x_up.at[:, ::STRIDE, ::STRIDE, :].set(x)
    x_pad = jnp.pad(x_up, ((0, 0), (PAD_LO, PAD_HI), (PAD_LO, PAD_HI), (0, 0)))

    # im2col hoisted out of the kernel: build the lane-dense patch matrix
    # (KKC, N*SPATIAL); column order = (image, spatial), row order = (ky,kx,cin).
    cols = []
    for ky in range(K):
        for kx in range(K):
            sl = x_pad[:, ky:ky + H_OUT, kx:kx + W_OUT, :]        # (N,16,16,C_IN)
            cols.append(sl.reshape(N * SPATIAL, C_IN))
    patches = jnp.concatenate(cols, axis=1).T                     # (90, 1536)

    # flip kernel 180°, reorder to im2col layout (C_OUT, K*K*C_IN)
    w_flip = jnp.transpose(w_torch[:, :, ::-1, ::-1],
                           (2, 3, 0, 1)).astype(jnp.float32)      # (K,K,C_IN,C_OUT)
    w2t = w_flip.reshape(KKC, C_OUT).T                            # (C_OUT, 90)
    b2 = bias.reshape(C_OUT, 1).astype(jnp.float32)

    out = pl.pallas_call(
        convt_kernel,
        out_shape=jax.ShapeDtypeStruct((N, C_OUT, SPATIAL), jnp.float32),
        grid_spec=pltpu.PrefetchScalarGridSpec(
            num_scalar_prefetch=0,
            grid=(N_STEPS,),
            in_specs=[
                pl.BlockSpec((C_OUT, KKC), lambda i: (0, 0)),
                pl.BlockSpec((C_OUT, 1), lambda i: (0, 0)),
                pl.BlockSpec((KKC, BLK_COLS), lambda i: (0, i)),
            ],
            out_specs=pl.BlockSpec((B_BLK, C_OUT, SPATIAL), lambda i: (i, 0, 0)),
        ),
        compiler_params=pltpu.CompilerParams(dimension_semantics=("parallel",)),
    )(w2t, b2, patches)

    # NCHW-direct: only a (free) reshape, no transpose.
    return out.reshape(N, C_OUT, H_OUT, W_OUT)


def reference(x_nchw, w_torch, bias):
    """Independent XLA reference: lhs-dilated conv == ConvTranspose2d."""
    x = jnp.transpose(x_nchw, (0, 2, 3, 1)).astype(jnp.float32)   # NHWC
    w_k = jnp.transpose(w_torch[:, :, ::-1, ::-1],
                        (2, 3, 0, 1)).astype(jnp.float32)         # HWIO
    v1 = lax.conv_general_dilated(
        x, w_k,
        window_strides=(1, 1),
        padding=[(PAD_LO, PAD_HI), (PAD_LO, PAD_HI)],
        lhs_dilation=(STRIDE, STRIDE),
        dimension_numbers=("NHWC", "HWIO", "NHWC"),
    ) + bias.reshape(1, 1, 1, C_OUT)
    v4 = jnp.where(v1 > 0, v1, v1 * NEG_SLOPE)
    return jnp.transpose(v4, (0, 3, 1, 2))


if __name__ == "__main__":
    key = jax.random.PRNGKey(0)
    kx, kw, kb = jax.random.split(key, 3)

    x4 = jax.random.normal(kx, (N, C_IN, H, W), dtype=jnp.float32)
    # ConvTranspose2d weight shape: (in_channels, out_channels, kH, kW)
    fan = C_IN * K * K
    bound = 1.0 / (fan ** 0.5)
    w = jax.random.uniform(kw, (C_IN, C_OUT, K, K), minval=-bound, maxval=bound,
                           dtype=jnp.float32)
    b = jax.random.uniform(kb, (C_OUT,), minval=-bound, maxval=bound,
                           dtype=jnp.float32)

    out = jax.block_until_ready(conv_transpose_leaky(x4, w, b))
    ref = jax.block_until_ready(reference(x4, w, b))

    assert out.shape == (N, C_OUT, H_OUT, W_OUT), out.shape
    assert jnp.allclose(out, ref, rtol=1e-4, atol=1e-4), float(
        jnp.max(jnp.abs(out - ref)))

    print("KERNEL_OK")
</pallas_src>

<mosaic_0001>
module attributes {stable_mosaic.version = 11 : i64} {
  func.func @convt_kernel(%arg0: i32, %arg1: memref<20x90xf32, #tpu.memory_space<vmem>>, %arg2: memref<20x1xf32, #tpu.memory_space<vmem>>, %arg3: memref<90x1536xf32, #tpu.memory_space<vmem>>, %arg4: memref<6x20x256xf32, #tpu.memory_space<vmem>>) attributes {dimension_semantics = [#tpu.dimension_semantics<parallel>], iteration_bounds = array<i64: 1>, scalar_prefetch = 0 : i64, scratch_operands = 0 : i64, tpu.core_type = #tpu.core_type<tc>, window_params = [{pipeline_mode = #tpu.pipeline_mode<synchronous>, transform_indices = @transform_0, window_bounds = array<i64: 20, 90>}, {pipeline_mode = #tpu.pipeline_mode<synchronous>, transform_indices = @transform_1, window_bounds = array<i64: 20, 1>}, {transform_indices = @transform_2, window_bounds = array<i64: 90, 1536>}, {transform_indices = @transform_3, window_bounds = array<i64: 6, 20, 256>}]} {
    %c0 = arith.constant 0 : index
    %c0_0 = arith.constant 0 : index
    %0 = vector.load %arg1[%c0, %c0_0] : memref<20x90xf32, #tpu.memory_space<vmem>>, vector<20x90xf32>
    %c0_1 = arith.constant 0 : index
    %c0_2 = arith.constant 0 : index
    %1 = vector.load %arg3[%c0_1, %c0_2] : memref<90x1536xf32, #tpu.memory_space<vmem>>, vector<90x1536xf32>
    %cst = arith.constant dense<0.000000e+00> : vector<20x1536xf32>
    %2 = tpu.matmul %0, %1, %cst {dimension_numbers = #tpu.dot_dimension_numbers<[1], [0], [0], [1], [0, 0, 1, 1], [], []>} : vector<20x90xf32>, vector<90x1536xf32>, vector<20x1536xf32> -> vector<20x1536xf32>
    %c0_3 = arith.constant 0 : index
    %c0_4 = arith.constant 0 : index
    %3 = vector.load %arg2[%c0_3, %c0_4] : memref<20x1xf32, #tpu.memory_space<vmem>>, vector<20x1xf32>
    %4 = vector.broadcast %3 : vector<20x1xf32> to vector<20x1536xf32>
    %5 = arith.addf %2, %4 : vector<20x1536xf32>
    %cst_5 = arith.constant 6.700000e-01 : f32
    %6 = vector.broadcast %cst_5 : f32 to vector<20x1536xf32>
    %7 = arith.mulf %6, %5 : vector<20x1536xf32>
    %8 = arith.maximumf %5, %7 : vector<20x1536xf32>
    %9 = vector.extract_strided_slice %8 {offsets = [0, 0], sizes = [20, 256], strides = [1, 1]} : vector<20x1536xf32> to vector<20x256xf32>
    %c0_6 = arith.constant 0 : index
    %c0_7 = arith.constant 0 : index
    %c0_8 = arith.constant 0 : index
    %10 = vector.load %arg4[%c0_6, %c0_7, %c0_8] : memref<6x20x256xf32, #tpu.memory_space<vmem>>, vector<1x20x256xf32>
    %11 = vector.shape_cast %10 : vector<1x20x256xf32> to vector<20x256xf32>
    %12 = vector.shape_cast %9 : vector<20x256xf32> to vector<1x20x256xf32>
    tpu.vector_store %arg4[%c0_6, %c0_7, %c0_8], %12 {strides = array<i32>} : memref<6x20x256xf32, #tpu.memory_space<vmem>>, vector<1x20x256xf32>,
    %13 = vector.extract_strided_slice %8 {offsets = [0, 256], sizes = [20, 256], strides = [1, 1]} : vector<20x1536xf32> to vector<20x256xf32>
    %c1 = arith.constant 1 : index
    %c0_9 = arith.constant 0 : index
    %c0_10 = arith.constant 0 : index
    %14 = vector.load %arg4[%c1, %c0_9, %c0_10] : memref<6x20x256xf32, #tpu.memory_space<vmem>>, vector<1x20x256xf32>
    %15 = vector.shape_cast %14 : vector<1x20x256xf32> to vector<20x256xf32>
    %16 = vector.shape_cast %13 : vector<20x256xf32> to vector<1x20x256xf32>
    tpu.vector_store %arg4[%c1, %c0_9, %c0_10], %16 {strides = array<i32>} : memref<6x20x256xf32, #tpu.memory_space<vmem>>, vector<1x20x256xf32>,
    %17 = vector.extract_strided_slice %8 {offsets = [0, 512], sizes = [20, 256], strides = [1, 1]} : vector<20x1536xf32> to vector<20x256xf32>
    %c2 = arith.constant 2 : index
    %c0_11 = arith.constant 0 : index
    %c0_12 = arith.constant 0 : index
    %18 = vector.load %arg4[%c2, %c0_11, %c0_12] : memref<6x20x256xf32, #tpu.memory_space<vmem>>, vector<1x20x256xf32>
    %19 = vector.shape_cast %18 : vector<1x20x256xf32> to vector<20x256xf32>
    %20 = vector.shape_cast %17 : vector<20x256xf32> to vector<1x20x256xf32>
    tpu.vector_store %arg4[%c2, %c0_11, %c0_12], %20 {strides = array<i32>} : memref<6x20x256xf32, #tpu.memory_space<vmem>>, vector<1x20x256xf32>,
    %21 = vector.extract_strided_slice %8 {offsets = [0, 768], sizes = [20, 256], strides = [1, 1]} : vector<20x1536xf32> to vector<20x256xf32>
    %c3 = arith.constant 3 : index
    %c0_13 = arith.constant 0 : index
    %c0_14 = arith.constant 0 : index
    %22 = vector.load %arg4[%c3, %c0_13, %c0_14] : memref<6x20x256xf32, #tpu.memory_space<vmem>>, vector<1x20x256xf32>
    %23 = vector.shape_cast %22 : vector<1x20x256xf32> to vector<20x256xf32>
    %24 = vector.shape_cast %21 : vector<20x256xf32> to vector<1x20x256xf32>
    tpu.vector_store %arg4[%c3, %c0_13, %c0_14], %24 {strides = array<i32>} : memref<6x20x256xf32, #tpu.memory_space<vmem>>, vector<1x20x256xf32>,
    %25 = vector.extract_strided_slice %8 {offsets = [0, 1024], sizes = [20, 256], strides = [1, 1]} : vector<20x1536xf32> to vector<20x256xf32>
    %c4 = arith.constant 4 : index
    %c0_15 = arith.constant 0 : index
    %c0_16 = arith.constant 0 : index
    %26 = vector.load %arg4[%c4, %c0_15, %c0_16] : memref<6x20x256xf32, #tpu.memory_space<vmem>>, vector<1x20x256xf32>
    %27 = vector.shape_cast %26 : vector<1x20x256xf32> to vector<20x256xf32>
    %28 = vector.shape_cast %25 : vector<20x256xf32> to vector<1x20x256xf32>
    tpu.vector_store %arg4[%c4, %c0_15, %c0_16], %28 {strides = array<i32>} : memref<6x20x256xf32, #tpu.memory_space<vmem>>, vector<1x20x256xf32>,
    %29 = vector.extract_strided_slice %8 {offsets = [0, 1280], sizes = [20, 256], strides = [1, 1]} : vector<20x1536xf32> to vector<20x256xf32>
    %c5 = arith.constant 5 : index
    %c0_17 = arith.constant 0 : index
    %c0_18 = arith.constant 0 : index
    %30 = vector.load %arg4[%c5, %c0_17, %c0_18] : memref<6x20x256xf32, #tpu.memory_space<vmem>>, vector<1x20x256xf32>
    %31 = vector.shape_cast %30 : vector<1x20x256xf32> to vector<20x256xf32>
    %32 = vector.shape_cast %29 : vector<20x256xf32> to vector<1x20x256xf32>
    tpu.vector_store %arg4[%c5, %c0_17, %c0_18], %32 {strides = array<i32>} : memref<6x20x256xf32, #tpu.memory_space<vmem>>, vector<1x20x256xf32>,
    return
  }
  func.func @transform_0(%arg0: i32) -> (i32, i32) {
    %c0_i32 = arith.constant 0 : i32
    %c0_i32_0 = arith.constant 0 : i32
    %c0_i32_1 = arith.constant 0 : i32
    return %c0_i32, %c0_i32_0 : i32, i32
  }
  func.func @transform_1(%arg0: i32) -> (i32, i32) {
    %c0_i32 = arith.constant 0 : i32
    %c0_i32_0 = arith.constant 0 : i32
    %c0_i32_1 = arith.constant 0 : i32
    return %c0_i32, %c0_i32_0 : i32, i32
  }
  func.func @transform_2(%arg0: i32) -> (i32, i32) {
    %c0_i32 = arith.constant 0 : i32
    %c0_i32_0 = arith.constant 0 : i32
    return %c0_i32, %arg0 : i32, i32
  }
  func.func @transform_3(%arg0: i32) -> (i32, i32, i32) {
    %c0_i32 = arith.constant 0 : i32
    %c0_i32_0 = arith.constant 0 : i32
    %c0_i32_1 = arith.constant 0 : i32
    return %arg0, %c0_i32, %c0_i32_0 : i32, i32, i32
  }
}

</mosaic_0001>

<llo_original>
// kernel: conv_transpose_leaky.1
$region0: #{conv_transpose_leaky.1}
  #allocation0 [shape = 'u32[]', space=smem, size = 0x4, offset = 0x4, fixed_abs, tag = 'smem constant byte address 0x4 - core index']
  #allocation1 [shape = 'u32[72,128]{1,0:T(1,128)}', space=vmem, size = 0x9000, scoped, tag = 'internal scratch']
  %s0 = inlined_call_operand.vmem [shape: f32[20,90], index: 0, kind: input, shape index: {}]
  %s1 = inlined_call_operand.vmem [shape: f32[20,1], index: 1, kind: input, shape index: {}]
  %s2 = inlined_call_operand.vmem [shape: f32[90,1536], index: 2, kind: input, shape index: {}]
  %s3 = inlined_call_operand.vmem [shape: f32[6,20,256], index: 3, kind: output, shape index: {}]
  %s4 = sld [smem:[#allocation0]]
  $region22: #{conv_transpose_leaky.1} parent=0
    _
  %s6 = ssub.s32 1, %s4
  %s7 = scalar_select 0, %s6, %s4
  // Predicated region
  $region2: #{conv_transpose_leaky.1} parent=0 // pred_check
    _
  $region3: #{conv_transpose_leaky.1} parent=0 // pred_check_branch
    %9 = sbr.rel (0) target = $region5
  $region4: #{conv_transpose_leaky.1} parent=0 // pred_region
    _
  $region5: #{conv_transpose_leaky.1} parent=0 // pred_fallthru
    _
  // Predicated region
  $region6: #{conv_transpose_leaky.1} parent=0 // pred_check
    _
  $region7: #{conv_transpose_leaky.1} parent=0 // pred_check_branch
    %11 = sbr.rel (0) target = $region9
  $region8: #{conv_transpose_leaky.1} parent=0 // pred_region
    _
  $region9: #{conv_transpose_leaky.1} parent=0 // pred_fallthru
    _
  // Predicated region
  $region10: #{conv_transpose_leaky.1} parent=0 // pred_check
    _
  $region11: #{conv_transpose_leaky.1} parent=0 // pred_check_branch
    %13 = sbr.rel (0) target = $region13
  $region12: #{conv_transpose_leaky.1} parent=0 // pred_region
    _
  $region13: #{conv_transpose_leaky.1} parent=0 // pred_fallthru
    _
  %v14 = vld [vmem:[%s0] sm:$0xff]
  %v15 = vld [vmem:[%s0 + $0x8] sm:$0xff]
  %v16 = vld [vmem:[%s0 + $0x10] sm:$0xf]
  %v17 = vld [vmem:[%s2] sm:$0xff]
  %v18 = vld [vmem:[%s2 + $0x8] sm:$0xff]
  %v19 = vld [vmem:[%s2 + $0x10] sm:$0xff]
  %v20 = vld [vmem:[%s2 + $0x18] sm:$0xff]
  %v21 = vld [vmem:[%s2 + $0x20] sm:$0xff]
  %v22 = vld [vmem:[%s2 + $0x28] sm:$0xff]
  %v23 = vld [vmem:[%s2 + $0x30] sm:$0xff]
  %v24 = vld [vmem:[%s2 + $0x38] sm:$0xff]
  %v25 = vld [vmem:[%s2 + $0x40] sm:$0xff]
  %v26 = vld [vmem:[%s2 + $0x48] sm:$0xff]
  %v27 = vld [vmem:[%s2 + $0x50] sm:$0xff]
  %v28 = vld [vmem:[%s2 + $0x58] sm:$0xff]
  %v29 = vld [vmem:[%s2 + $0x60] sm:$0xff]
  %v30 = vld [vmem:[%s2 + $0x68] sm:$0xff]
  %v31 = vld [vmem:[%s2 + $0x70] sm:$0xff]
  %v32 = vld [vmem:[%s2 + $0x78] sm:$0xff]
  %v33 = vld [vmem:[%s2 + $0x80] sm:$0xff]
  %v34 = vld [vmem:[%s2 + $0x88] sm:$0xff]
  %v35 = vld [vmem:[%s2 + $0x90] sm:$0xff]
  %v36 = vld [vmem:[%s2 + $0x98] sm:$0xff]
  %v37 = vld [vmem:[%s2 + $0xa0] sm:$0xff]
  %v38 = vld [vmem:[%s2 + $0xa8] sm:$0xff]
  %v39 = vld [vmem:[%s2 + $0xb0] sm:$0xff]
  %v40 = vld [vmem:[%s2 + $0xb8] sm:$0xff]
  %v41 = vld [vmem:[%s2 + $0xc0] sm:$0xff]
  %v42 = vld [vmem:[%s2 + $0xc8] sm:$0xff]
  %v43 = vld [vmem:[%s2 + $0xd0] sm:$0xff]
  %v44 = vld [vmem:[%s2 + $0xd8] sm:$0xff]
  %v45 = vld [vmem:[%s2 + $0xe0] sm:$0xff]
  %v46 = vld [vmem:[%s2 + $0xe8] sm:$0xff]
  %v47 = vld [vmem:[%s2 + $0xf0] sm:$0xff]
  %v48 = vld [vmem:[%s2 + $0xf8] sm:$0xff]
  %v49 = vld [vmem:[%s2 + $0x100] sm:$0xff]
  %v50 = vld [vmem:[%s2 + $0x108] sm:$0xff]
  %v51 = vld [vmem:[%s2 + $0x110] sm:$0xff]
  %v52 = vld [vmem:[%s2 + $0x118] sm:$0xff]
  %v53 = vld [vmem:[%s2 + $0x120] sm:$0xff]
  %v54 = vld [vmem:[%s2 + $0x128] sm:$0xff]
  %v55 = vld [vmem:[%s2 + $0x130] sm:$0xff]
  %v56 = vld [vmem:[%s2 + $0x138] sm:$0xff]
  %v57 = vld [vmem:[%s2 + $0x140] sm:$0xff]
  %v58 = vld [vmem:[%s2 + $0x148] sm:$0xff]
  %v59 = vld [vmem:[%s2 + $0x150] sm:$0xff]
  %v60 = vld [vmem:[%s2 + $0x158] sm:$0xff]
  %v61 = vld [vmem:[%s2 + $0x160] sm:$0xff]
  %v62 = vld [vmem:[%s2 + $0x168] sm:$0xff]
  %v63 = vld [vmem:[%s2 + $0x170] sm:$0xff]
  %v64 = vld [vmem:[%s2 + $0x178] sm:$0xff]
  %v65 = vld [vmem:[%s2 + $0x180] sm:$0xff]
  %v66 = vld [vmem:[%s2 + $0x188] sm:$0xff]
  %v67 = vld [vmem:[%s2 + $0x190] sm:$0xff]
  %v68 = vld [vmem:[%s2 + $0x198] sm:$0xff]
  %v69 = vld [vmem:[%s2 + $0x1a0] sm:$0xff]
  %v70 = vld [vmem:[%s2 + $0x1a8] sm:$0xff]
  %v71 = vld [vmem:[%s2 + $0x1b0] sm:$0xff]
  %v72 = vld [vmem:[%s2 + $0x1b8] sm:$0xff]
  %v73 = vld [vmem:[%s2 + $0x1c0] sm:$0xff]
  %v74 = vld [vmem:[%s2 + $0x1c8] sm:$0xff]
  %v75 = vld [vmem:[%s2 + $0x1d0] sm:$0xff]
  %v76 = vld [vmem:[%s2 + $0x1d8] sm:$0xff]
  %v77 = vld [vmem:[%s2 + $0x1e0] sm:$0xff]
  %v78 = vld [vmem:[%s2 + $0x1e8] sm:$0xff]
  %v79 = vld [vmem:[%s2 + $0x1f0] sm:$0xff]
  %v80 = vld [vmem:[%s2 + $0x1f8] sm:$0xff]
  %v81 = vld [vmem:[%s2 + $0x200] sm:$0xff]
  %v82 = vld [vmem:[%s2 + $0x208] sm:$0xff]
  %v83 = vld [vmem:[%s2 + $0x210] sm:$0xff]
  %v84 = vld [vmem:[%s2 + $0x218] sm:$0xff]
  %v85 = vld [vmem:[%s2 + $0x220] sm:$0xff]
  %v86 = vld [vmem:[%s2 + $0x228] sm:$0xff]
  %v87 = vld [vmem:[%s2 + $0x230] sm:$0xff]
  %v88 = vld [vmem:[%s2 + $0x238] sm:$0xff]
  %v89 = vld [vmem:[%s2 + $0x240] sm:$0xff]
  %v90 = vld [vmem:[%s2 + $0x248] sm:$0xff]
  %v91 = vld [vmem:[%s2 + $0x250] sm:$0xff]
  %v92 = vld [vmem:[%s2 + $0x258] sm:$0xff]
  %v93 = vld [vmem:[%s2 + $0x260] sm:$0xff]
  %v94 = vld [vmem:[%s2 + $0x268] sm:$0xff]
  %v95 = vld [vmem:[%s2 + $0x270] sm:$0xff]
  %v96 = vld [vmem:[%s2 + $0x278] sm:$0xff]
  %v97 = vld [vmem:[%s2 + $0x280] sm:$0xff]
  %v98 = vld [vmem:[%s2 + $0x288] sm:$0xff]
  %v99 = vld [vmem:[%s2 + $0x290] sm:$0xff]
  %v100 = vld [vmem:[%s2 + $0x298] sm:$0xff]
  %v101 = vld [vmem:[%s2 + $0x2a0] sm:$0xff]
  %v102 = vld [vmem:[%s2 + $0x2a8] sm:$0xff]
  %v103 = vld [vmem:[%s2 + $0x2b0] sm:$0xff]
  %v104 = vld [vmem:[%s2 + $0x2b8] sm:$0xff]
  %v105 = vld [vmem:[%s2 + $0x2c0] sm:$0xff]
  %v106 = vld [vmem:[%s2 + $0x2c8] sm:$0xff]
  %v107 = vld [vmem:[%s2 + $0x2d0] sm:$0xff]
  %v108 = vld [vmem:[%s2 + $0x2d8] sm:$0xff]
  %v109 = vld [vmem:[%s2 + $0x2e0] sm:$0xff]
  %v110 = vld [vmem:[%s2 + $0x2e8] sm:$0xff]
  %v111 = vld [vmem:[%s2 + $0x2f0] sm:$0xff]
  %v112 = vld [vmem:[%s2 + $0x2f8] sm:$0xff]
  %v113 = vld [vmem:[%s2 + $0x300] sm:$0xff]
  %v114 = vld [vmem:[%s2 + $0x308] sm:$0xff]
  %v115 = vld [vmem:[%s2 + $0x310] sm:$0xff]
  %v116 = vld [vmem:[%s2 + $0x318] sm:$0xff]
  %v117 = vld [vmem:[%s2 + $0x320] sm:$0xff]
  %v118 = vld [vmem:[%s2 + $0x328] sm:$0xff]
  %v119 = vld [vmem:[%s2 + $0x330] sm:$0xff]
  %v120 = vld [vmem:[%s2 + $0x338] sm:$0xff]
  %v121 = vld [vmem:[%s2 + $0x340] sm:$0xff]
  %v122 = vld [vmem:[%s2 + $0x348] sm:$0xff]
  %v123 = vld [vmem:[%s2 + $0x350] sm:$0xff]
  %v124 = vld [vmem:[%s2 + $0x358] sm:$0xff]
  %v125 = vld [vmem:[%s2 + $0x360] sm:$0xff]
  %v126 = vld [vmem:[%s2 + $0x368] sm:$0xff]
  %v127 = vld [vmem:[%s2 + $0x370] sm:$0xff]
  %v128 = vld [vmem:[%s2 + $0x378] sm:$0xff]
  %v129 = vld [vmem:[%s2 + $0x380] sm:$0xff]
  %v130 = vld [vmem:[%s2 + $0x388] sm:$0xff]
  %v131 = vld [vmem:[%s2 + $0x390] sm:$0xff]
  %v132 = vld [vmem:[%s2 + $0x398] sm:$0xff]
  %v133 = vld [vmem:[%s2 + $0x3a0] sm:$0xff]
  %v134 = vld [vmem:[%s2 + $0x3a8] sm:$0xff]
  %v135 = vld [vmem:[%s2 + $0x3b0] sm:$0xff]
  %v136 = vld [vmem:[%s2 + $0x3b8] sm:$0xff]
  %v137 = vld [vmem:[%s2 + $0x3c0] sm:$0xff]
  %v138 = vld [vmem:[%s2 + $0x3c8] sm:$0xff]
  %v139 = vld [vmem:[%s2 + $0x3d0] sm:$0xff]
  %v140 = vld [vmem:[%s2 + $0x3d8] sm:$0xff]
  %v141 = vld [vmem:[%s2 + $0x3e0] sm:$0xff]
  %v142 = vld [vmem:[%s2 + $0x3e8] sm:$0xff]
  %v143 = vld [vmem:[%s2 + $0x3f0] sm:$0xff]
  %v144 = vld [vmem:[%s2 + $0x3f8] sm:$0xff]
  %v145 = vld [vmem:[%s2 + $0x400] sm:$0xff]
  %v146 = vld [vmem:[%s2 + $0x408] sm:$0xff]
  %v147 = vld [vmem:[%s2 + $0x410] sm:$0xff]
  %v148 = vld [vmem:[%s2 + $0x418] sm:$0xff]
  %v149 = vld [vmem:[%s2 + $0x420] sm:$0x3]
  %v150 = vld [vmem:[%s2 + $0x428] sm:$0x3]
  %v151 = vld [vmem:[%s2 + $0x430] sm:$0x3]
  %v152 = vld [vmem:[%s2 + $0x438] sm:$0x3]
  %v153 = vld [vmem:[%s2 + $0x440] sm:$0x3]
  %v154 = vld [vmem:[%s2 + $0x448] sm:$0x3]
  %v155 = vld [vmem:[%s2 + $0x450] sm:$0x3]
  %v156 = vld [vmem:[%s2 + $0x458] sm:$0x3]
  %v157 = vld [vmem:[%s2 + $0x460] sm:$0x3]
  %v158 = vld [vmem:[%s2 + $0x468] sm:$0x3]
  %v159 = vld [vmem:[%s2 + $0x470] sm:$0x3]
  %v160 = vld [vmem:[%s2 + $0x478] sm:$0x3]
  %v161 = vld [vmem:[%s1] sm:$0xff]
  %v162 = vld [vmem:[%s1 + $0x8] sm:$0xff]
  %v163 = vld [vmem:[%s1 + $0x10] sm:$0xf]
  %165 = vset.pattern.permute.xlu0 0
  %166 = vperm.xlu0 %165, %v161
  %v167 = vpop.permute.xlu0 %166
  %170 = vset.pattern.permute.xlu0 0
  %171 = vperm.xlu0 %170, %v162
  %v172 = vpop.permute.xlu0 %171
  %175 = vset.pattern.permute.xlu0 0
  %176 = vperm.xlu0 %175, %v163
  %v177 = vpop.permute.xlu0 %176
  %vm179 = vcmask 736256
  %v181 = vsel %vm179, %v14, 0
  %v184 = vsel %vm179, %v15, 0
  %v187 = vsel %vm179, %v16, 0
  %vm189 = vcmask 1041408
  %v191 = vsel %vm189, %v149, 0
  %v194 = vsel %vm189, %v150, 0
  %v197 = vsel %vm189, %v151, 0
  %v200 = vsel %vm189, %v152, 0
  %v203 = vsel %vm189, %v153, 0
  %v206 = vsel %vm189, %v154, 0
  %v209 = vsel %vm189, %v155, 0
  %v212 = vsel %vm189, %v156, 0
  %v215 = vsel %vm189, %v157, 0
  %v218 = vsel %vm189, %v158, 0
  %v221 = vsel %vm189, %v159, 0
  %v224 = vsel %vm189, %v160, 0
  %226 = vmatpush.msra.mxu0 0.0
  %227 = vmatpush.msra.mxu0 0.0
  %228 = vmatpush.msra.mxu0 0.0
  %229 = vmatpush.msra.mxu0 0.0
  %230 = vmatpush.msra.mxu0 %v191
  %231 = vmatpush.msra.mxu0 %v137
  %232 = vmatpush.msra.mxu0 %v125
  %233 = vmatpush.msra.mxu0 %v113
  %234 = vmatpush.msra.mxu0 %v101
  %235 = vmatpush.msra.mxu0 %v89
  %236 = vmatpush.msra.mxu0 %v77
  %237 = vmatpush.msra.mxu0 %v65
  %238 = vmatpush.msra.mxu0 %v53
  %239 = vmatpush.msra.mxu0 %v41
  %240 = vmatpush.msra.mxu0 %v29
  %241 = vmatpush.msra.mxu0 %v17
  %242 = vmatmul.f32.gmra.mxu0 %v181
  %v243 = vpop.f32.mrf.mxu0
  %v244 = vadd.f32 %v167, %v243
  %245 = vmatmul.f32.gmra.mxu0 %v184
  %v246 = vpop.f32.mrf.mxu0
  %v247 = vadd.f32 %v172, %v246
  %248 = vmatmul.f32.gmra.mxu0 %v187
  %v249 = vpop.f32.mrf.mxu0
  %v250 = vadd.f32 %v177, %v249
  %251 = vdwg.mxu0
  %252 = vmatpush.msra.mxu0 0.0
  %253 = vmatpush.msra.mxu0 0.0
  %254 = vmatpush.msra.mxu0 0.0
  %255 = vmatpush.msra.mxu0 0.0
  %256 = vmatpush.msra.mxu0 %v194
  %257 = vmatpush.msra.mxu0 %v138
  %258 = vmatpush.msra.mxu0 %v126
  %259 = vmatpush.msra.mxu0 %v114
  %260 = vmatpush.msra.mxu0 %v102
  %261 = vmatpush.msra.mxu0 %v90
  %262 = vmatpush.msra.mxu0 %v78
  %263 = vmatpush.msra.mxu0 %v66
  %264 = vmatpush.msra.mxu0 %v54
  %265 = vmatpush.msra.mxu0 %v42
  %266 = vmatpush.msra.mxu0 %v30
  %267 = vmatpush.msra.mxu0 %v18
  %268 = vmatmul.f32.gmra.mxu0 %v181
  %v269 = vpop.f32.mrf.mxu0
  %v270 = vadd.f32 %v167, %v269
  %271 = vmatmul.f32.gmra.mxu0 %v184
  %v272 = vpop.f32.mrf.mxu0
  %v273 = vadd.f32 %v172, %v272
  %274 = vmatmul.f32.gmra.mxu0 %v187
  %v275 = vpop.f32.mrf.mxu0
  %v276 = vadd.f32 %v177, %v275
  %277 = vdwg.mxu0
  %278 = vmatpush.msra.mxu0 0.0
  %279 = vmatpush.msra.mxu0 0.0
  %280 = vmatpush.msra.mxu0 0.0
  %281 = vmatpush.msra.mxu0 0.0
  %282 = vmatpush.msra.mxu0 %v197
  %283 = vmatpush.msra.mxu0 %v139
  %284 = vmatpush.msra.mxu0 %v127
  %285 = vmatpush.msra.mxu0 %v115
  %286 = vmatpush.msra.mxu0 %v103
  %287 = vmatpush.msra.mxu0 %v91
  %288 = vmatpush.msra.mxu0 %v79
  %289 = vmatpush.msra.mxu0 %v67
  %290 = vmatpush.msra.mxu0 %v55
  %291 = vmatpush.msra.mxu0 %v43
  %292 = vmatpush.msra.mxu0 %v31
  %293 = vmatpush.msra.mxu0 %v19
  %294 = vmatmul.f32.gmra.mxu0 %v181
  %v295 = vpop.f32.mrf.mxu0
  %v296 = vadd.f32 %v167, %v295
  %297 = vmatmul.f32.gmra.mxu0 %v184
  %v298 = vpop.f32.mrf.mxu0
  %v299 = vadd.f32 %v172, %v298
  %300 = vmatmul.f32.gmra.mxu0 %v187
  %v301 = vpop.f32.mrf.mxu0
  %v302 = vadd.f32 %v177, %v301
  %303 = vdwg.mxu0
  %304 = vmatpush.msra.mxu0 0.0
  %305 = vmatpush.msra.mxu0 0.0
  %306 = vmatpush.msra.mxu0 0.0
  %307 = vmatpush.msra.mxu0 0.0
  %308 = vmatpush.msra.mxu0 %v200
  %309 = vmatpush.msra.mxu0 %v140
  %310 = vmatpush.msra.mxu0 %v128
  %311 = vmatpush.msra.mxu0 %v116
  %312 = vmatpush.msra.mxu0 %v104
  %313 = vmatpush.msra.mxu0 %v92
  %314 = vmatpush.msra.mxu0 %v80
  %315 = vmatpush.msra.mxu0 %v68
  %316 = vmatpush.msra.mxu0 %v56
  %317 = vmatpush.msra.mxu0 %v44
  %318 = vmatpush.msra.mxu0 %v32
  %319 = vmatpush.msra.mxu0 %v20
  %320 = vmatmul.f32.gmra.mxu0 %v181
  %v321 = vpop.f32.mrf.mxu0
  %v322 = vadd.f32 %v167, %v321
  %323 = vmatmul.f32.gmra.mxu0 %v184
  %v324 = vpop.f32.mrf.mxu0
  %v325 = vadd.f32 %v172, %v324
  %326 = vmatmul.f32.gmra.mxu0 %v187
  %v327 = vpop.f32.mrf.mxu0
  %v328 = vadd.f32 %v177, %v327
  %329 = vdwg.mxu0
  %330 = vmatpush.msra.mxu0 0.0
  %331 = vmatpush.msra.mxu0 0.0
  %332 = vmatpush.msra.mxu0 0.0
  %333 = vmatpush.msra.mxu0 0.0
  %334 = vmatpush.msra.mxu0 %v203
  %335 = vmatpush.msra.mxu0 %v141
  %336 = vmatpush.msra.mxu0 %v129
  %337 = vmatpush.msra.mxu0 %v117
  %338 = vmatpush.msra.mxu0 %v105
  %339 = vmatpush.msra.mxu0 %v93
  %340 = vmatpush.msra.mxu0 %v81
  %341 = vmatpush.msra.mxu0 %v69
  %342 = vmatpush.msra.mxu0 %v57
  %343 = vmatpush.msra.mxu0 %v45
  %344 = vmatpush.msra.mxu0 %v33
  %345 = vmatpush.msra.mxu0 %v21
  %346 = vmatmul.f32.gmra.mxu0 %v181
  %v347 = vpop.f32.mrf.mxu0
  %v348 = vadd.f32 %v167, %v347
  %349 = vmatmul.f32.gmra.mxu0 %v184
  %v350 = vpop.f32.mrf.mxu0
  %v351 = vadd.f32 %v172, %v350
  %352 = vmatmul.f32.gmra.mxu0 %v187
  %v353 = vpop.f32.mrf.mxu0
  %v354 = vadd.f32 %v177, %v353
  %355 = vdwg.mxu0
  %356 = vmatpush.msra.mxu0 0.0
  %357 = vmatpush.msra.mxu0 0.0
  %358 = vmatpush.msra.mxu0 0.0
  %359 = vmatpush.msra.mxu0 0.0
  %360 = vmatpush.msra.mxu0 %v206
  %361 = vmatpush.msra.mxu0 %v142
  %362 = vmatpush.msra.mxu0 %v130
  %363 = vmatpush.msra.mxu0 %v118
  %364 = vmatpush.msra.mxu0 %v106
  %365 = vmatpush.msra.mxu0 %v94
  %366 = vmatpush.msra.mxu0 %v82
  %367 = vmatpush.msra.mxu0 %v70
  %368 = vmatpush.msra.mxu0 %v58
  %369 = vmatpush.msra.mxu0 %v46
  %370 = vmatpush.msra.mxu0 %v34
  %371 = vmatpush.msra.mxu0 %v22
  %372 = vmatmul.f32.gmra.mxu0 %v181
  %v373 = vpop.f32.mrf.mxu0
  %v374 = vadd.f32 %v167, %v373
  %375 = vmatmul.f32.gmra.mxu0 %v184
  %v376 = vpop.f32.mrf.mxu0
  %v377 = vadd.f32 %v172, %v376
  %378 = vmatmul.f32.gmra.mxu0 %v187
  %v379 = vpop.f32.mrf.mxu0
  %v380 = vadd.f32 %v177, %v379
  %381 = vdwg.mxu0
  %382 = vmatpush.msra.mxu0 0.0
  %383 = vmatpush.msra.mxu0 0.0
  %384 = vmatpush.msra.mxu0 0.0
  %385 = vmatpush.msra.mxu0 0.0
  %386 = vmatpush.msra.mxu0 %v209
  %387 = vmatpush.msra.mxu0 %v143
  %388 = vmatpush.msra.mxu0 %v131
  %389 = vmatpush.msra.mxu0 %v119
  %390 = vmatpush.msra.mxu0 %v107
  %391 = vmatpush.msra.mxu0 %v95
  %392 = vmatpush.msra.mxu0 %v83
  %393 = vmatpush.msra.mxu0 %v71
  %394 = vmatpush.msra.mxu0 %v59
  %395 = vmatpush.msra.mxu0 %v47
  %396 = vmatpush.msra.mxu0 %v35
  %397 = vmatpush.msra.mxu0 %v23
  %398 = vmatmul.f32.gmra.mxu0 %v181
  %v399 = vpop.f32.mrf.mxu0
  %v400 = vadd.f32 %v167, %v399
  %401 = vmatmul.f32.gmra.mxu0 %v184
  %v402 = vpop.f32.mrf.mxu0
  %v403 = vadd.f32 %v172, %v402
  %404 = vmatmul.f32.gmra.mxu0 %v187
  %v405 = vpop.f32.mrf.mxu0
  %v406 = vadd.f32 %v177, %v405
  %407 = vdwg.mxu0
  %408 = vmatpush.msra.mxu0 0.0
  %409 = vmatpush.msra.mxu0 0.0
  %410 = vmatpush.msra.mxu0 0.0
  %411 = vmatpush.msra.mxu0 0.0
  %412 = vmatpush.msra.mxu0 %v212
  %413 = vmatpush.msra.mxu0 %v144
  %414 = vmatpush.msra.mxu0 %v132
  %415 = vmatpush.msra.mxu0 %v120
  %416 = vmatpush.msra.mxu0 %v108
  %417 = vmatpush.msra.mxu0 %v96
  %418 = vmatpush.msra.mxu0 %v84
  %419 = vmatpush.msra.mxu0 %v72
  %420 = vmatpush.msra.mxu0 %v60
  %421 = vmatpush.msra.mxu0 %v48
  %422 = vmatpush.msra.mxu0 %v36
  %423 = vmatpush.msra.mxu0 %v24
  %424 = vmatmul.f32.gmra.mxu0 %v181
  %v425 = vpop.f32.mrf.mxu0
  %v426 = vadd.f32 %v167, %v425
  %427 = vmatmul.f32.gmra.mxu0 %v184
  %v428 = vpop.f32.mrf.mxu0
  %v429 = vadd.f32 %v172, %v428
  %430 = vmatmul.f32.gmra.mxu0 %v187
  %v431 = vpop.f32.mrf.mxu0
  %v432 = vadd.f32 %v177, %v431
  %433 = vdwg.mxu0
  %434 = vmatpush.msra.mxu0 0.0
  %435 = vmatpush.msra.mxu0 0.0
  %436 = vmatpush.msra.mxu0 0.0
  %437 = vmatpush.msra.mxu0 0.0
  %438 = vmatpush.msra.mxu0 %v215
  %439 = vmatpush.msra.mxu0 %v145
  %440 = vmatpush.msra.mxu0 %v133
  %441 = vmatpush.msra.mxu0 %v121
  %442 = vmatpush.msra.mxu0 %v109
  %443 = vmatpush.msra.mxu0 %v97
  %444 = vmatpush.msra.mxu0 %v85
  %445 = vmatpush.msra.mxu0 %v73
  %446 = vmatpush.msra.mxu0 %v61
  %447 = vmatpush.msra.mxu0 %v49
  %448 = vmatpush.msra.mxu0 %v37
  %449 = vmatpush.msra.mxu0 %v25
  %450 = vmatmul.f32.gmra.mxu0 %v181
  %v451 = vpop.f32.mrf.mxu0
  %v452 = vadd.f32 %v167, %v451
  %453 = vmatmul.f32.gmra.mxu0 %v184
  %v454 = vpop.f32.mrf.mxu0
  %v455 = vadd.f32 %v172, %v454
  %456 = vmatmul.f32.gmra.mxu0 %v187
  %v457 = vpop.f32.mrf.mxu0
  %v458 = vadd.f32 %v177, %v457
  %459 = vdwg.mxu0
  %460 = vmatpush.msra.mxu0 0.0
  %461 = vmatpush.msra.mxu0 0.0
  %462 = vmatpush.msra.mxu0 0.0
  %463 = vmatpush.msra.mxu0 0.0
  %464 = vmatpush.msra.mxu0 %v218
  %465 = vmatpush.msra.mxu0 %v146
  %466 = vmatpush.msra.mxu0 %v134
  %467 = vmatpush.msra.mxu0 %v122
  %468 = vmatpush.msra.mxu0 %v110
  %469 = vmatpush.msra.mxu0 %v98
  %470 = vmatpush.msra.mxu0 %v86
  %471 = vmatpush.msra.mxu0 %v74
  %472 = vmatpush.msra.mxu0 %v62
  %473 = vmatpush.msra.mxu0 %v50
  %474 = vmatpush.msra.mxu0 %v38
  %475 = vmatpush.msra.mxu0 %v26
  %476 = vmatmul.f32.gmra.mxu0 %v181
  %v477 = vpop.f32.mrf.mxu0
  %v478 = vadd.f32 %v167, %v477
  %479 = vmatmul.f32.gmra.mxu0 %v184
  %v480 = vpop.f32.mrf.mxu0
  %v481 = vadd.f32 %v172, %v480
  %482 = vmatmul.f32.gmra.mxu0 %v187
  %v483 = vpop.f32.mrf.mxu0
  %v484 = vadd.f32 %v177, %v483
  %485 = vdwg.mxu0
  %486 = vmatpush.msra.mxu0 0.0
  %487 = vmatpush.msra.mxu0 0.0
  %488 = vmatpush.msra.mxu0 0.0
  %489 = vmatpush.msra.mxu0 0.0
  %490 = vmatpush.msra.mxu0 %v221
  %491 = vmatpush.msra.mxu0 %v147
  %492 = vmatpush.msra.mxu0 %v135
  %493 = vmatpush.msra.mxu0 %v123
  %494 = vmatpush.msra.mxu0 %v111
  %495 = vmatpush.msra.mxu0 %v99
  %496 = vmatpush.msra.mxu0 %v87
  %497 = vmatpush.msra.mxu0 %v75
  %498 = vmatpush.msra.mxu0 %v63
  %499 = vmatpush.msra.mxu0 %v51
  %500 = vmatpush.msra.mxu0 %v39
  %501 = vmatpush.msra.mxu0 %v27
  %502 = vmatmul.f32.gmra.mxu0 %v181
  %v503 = vpop.f32.mrf.mxu0
  %v504 = vadd.f32 %v167, %v503
  %505 = vmatmul.f32.gmra.mxu0 %v184
  %v506 = vpop.f32.mrf.mxu0
  %v507 = vadd.f32 %v172, %v506
  %508 = vmatmul.f32.gmra.mxu0 %v187
  %v509 = vpop.f32.mrf.mxu0
  %v510 = vadd.f32 %v177, %v509
  %511 = vdwg.mxu0
  %512 = vmatpush.msra.mxu0 0.0
  %513 = vmatpush.msra.mxu0 0.0
  %514 = vmatpush.msra.mxu0 0.0
  %515 = vmatpush.msra.mxu0 0.0
  %516 = vmatpush.msra.mxu0 %v224
  %517 = vmatpush.msra.mxu0 %v148
  %518 = vmatpush.msra.mxu0 %v136
  %519 = vmatpush.msra.mxu0 %v124
  %520 = vmatpush.msra.mxu0 %v112
  %521 = vmatpush.msra.mxu0 %v100
  %522 = vmatpush.msra.mxu0 %v88
  %523 = vmatpush.msra.mxu0 %v76
  %524 = vmatpush.msra.mxu0 %v64
  %525 = vmatpush.msra.mxu0 %v52
  %526 = vmatpush.msra.mxu0 %v40
  %527 = vmatpush.msra.mxu0 %v28
  %528 = vmatmul.f32.gmra.mxu0 %v181
  %v529 = vpop.f32.mrf.mxu0
  %v530 = vadd.f32 %v167, %v529
  %531 = vmatmul.f32.gmra.mxu0 %v184
  %v532 = vpop.f32.mrf.mxu0
  %v533 = vadd.f32 %v172, %v532
  %534 = vmatmul.f32.gmra.mxu0 %v187
  %v535 = vpop.f32.mrf.mxu0
  %v536 = vadd.f32 %v177, %v535
  %537 = vdwg.mxu0
  %v538 = vmul.f32 %v244, 0.67
  %v539 = vmul.f32 %v270, 0.67
  %v540 = vmul.f32 %v296, 0.67
  %v541 = vmul.f32 %v322, 0.67
  %v542 = vmul.f32 %v348, 0.67
  %v543 = vmul.f32 %v374, 0.67
  %v544 = vmul.f32 %v400, 0.67
  %v545 = vmul.f32 %v426, 0.67
  %v546 = vmul.f32 %v452, 0.67
  %v547 = vmul.f32 %v478, 0.67
  %v548 = vmul.f32 %v504, 0.67
  %v549 = vmul.f32 %v530, 0.67
  %v550 = vmul.f32 %v247, 0.67
  %v551 = vmul.f32 %v273, 0.67
  %v552 = vmul.f32 %v299, 0.67
  %v553 = vmul.f32 %v325, 0.67
  %v554 = vmul.f32 %v351, 0.67
  %v555 = vmul.f32 %v377, 0.67
  %v556 = vmul.f32 %v403, 0.67
  %v557 = vmul.f32 %v429, 0.67
  %v558 = vmul.f32 %v455, 0.67
  %v559 = vmul.f32 %v481, 0.67
  %v560 = vmul.f32 %v507, 0.67
  %v561 = vmul.f32 %v533, 0.67
  %v562 = vmul.f32 %v250, 0.67
  %v563 = vmul.f32 %v276, 0.67
  %v564 = vmul.f32 %v302, 0.67
  %v565 = vmul.f32 %v328, 0.67
  %v566 = vmul.f32 %v354, 0.67
  %v567 = vmul.f32 %v380, 0.67
  %v568 = vmul.f32 %v406, 0.67
  %v569 = vmul.f32 %v432, 0.67
  %v570 = vmul.f32 %v458, 0.67
  %v571 = vmul.f32 %v484, 0.67
  %v572 = vmul.f32 %v510, 0.67
  %v573 = vmul.f32 %v536, 0.67
  %v574 = vmax.f32 %v244, %v538
  %v575 = vmax.f32 %v270, %v539
  %v576 = vmax.f32 %v296, %v540
  %v577 = vmax.f32 %v322, %v541
  %v578 = vmax.f32 %v348, %v542
  %v579 = vmax.f32 %v374, %v543
  %v580 = vmax.f32 %v400, %v544
  %v581 = vmax.f32 %v426, %v545
  %v582 = vmax.f32 %v452, %v546
  %v583 = vmax.f32 %v478, %v547
  %v584 = vmax.f32 %v504, %v548
  %v585 = vmax.f32 %v530, %v549
  %v586 = vmax.f32 %v247, %v550
  %v587 = vmax.f32 %v273, %v551
  %v588 = vmax.f32 %v299, %v552
  %v589 = vmax.f32 %v325, %v553
  %v590 = vmax.f32 %v351, %v554
  %v591 = vmax.f32 %v377, %v555
  %v592 = vmax.f32 %v403, %v556
  %v593 = vmax.f32 %v429, %v557
  %v594 = vmax.f32 %v455, %v558
  %v595 = vmax.f32 %v481, %v559
  %v596 = vmax.f32 %v507, %v560
  %v597 = vmax.f32 %v533, %v561
  %v598 = vmax.f32 %v250, %v562
  %v599 = vmax.f32 %v276, %v563
  %v600 = vmax.f32 %v302, %v564
  %v601 = vmax.f32 %v328, %v565
  %v602 = vmax.f32 %v354, %v566
  %v603 = vmax.f32 %v380, %v567
  %v604 = vmax.f32 %v406, %v568
  %v605 = vmax.f32 %v432, %v569
  %v606 = vmax.f32 %v458, %v570
  %v607 = vmax.f32 %v484, %v571
  %v608 = vmax.f32 %v510, %v572
  %v609 = vmax.f32 %v536, %v573
  %610 = vst [vmem:[%s3] sm:$0xff] %v574
  %611 = vst [vmem:[%s3 + $0x8] sm:$0xff] %v575
  %612 = vst [vmem:[%s3 + $0x10] sm:$0xff] %v586
  %613 = vst [vmem:[%s3 + $0x18] sm:$0xff] %v587
  %614 = vst [vmem:[%s3 + $0x20] sm:$0xf] %v598
  %615 = vst [vmem:[%s3 + $0x28] sm:$0xf] %v599
  %s616 = scalar_lea.vmem %s3, 48
  %617 = vst [vmem:[%s616] sm:$0xff] %v576
  %618 = vst [vmem:[%s616 + $0x8] sm:$0xff] %v577
  %619 = vst [vmem:[%s616 + $0x10] sm:$0xff] %v588
  %620 = vst [vmem:[%s616 + $0x18] sm:$0xff] %v589
  %621 = vst [vmem:[%s616 + $0x20] sm:$0xf] %v600
  %622 = vst [vmem:[%s616 + $0x28] sm:$0xf] %v601
  %s623 = scalar_lea.vmem %s3, 96
  %624 = vst [vmem:[%s623] sm:$0xff] %v578
  %625 = vst [vmem:[%s623 + $0x8] sm:$0xff] %v579
  %626 = vst [vmem:[%s623 + $0x10] sm:$0xff] %v590
  %627 = vst [vmem:[%s623 + $0x18] sm:$0xff] %v591
  %628 = vst [vmem:[%s623 + $0x20] sm:$0xf] %v602
  %629 = vst [vmem:[%s623 + $0x28] sm:$0xf] %v603
  %s630 = scalar_lea.vmem %s3, 144
  %631 = vst [vmem:[%s630] sm:$0xff] %v580
  %632 = vst [vmem:[%s630 + $0x8] sm:$0xff] %v581
  %633 = vst [vmem:[%s630 + $0x10] sm:$0xff] %v592
  %634 = vst [vmem:[%s630 + $0x18] sm:$0xff] %v593
  %635 = vst [vmem:[%s630 + $0x20] sm:$0xf] %v604
  %636 = vst [vmem:[%s630 + $0x28] sm:$0xf] %v605
  %s637 = scalar_lea.vmem %s3, 192
  %638 = vst [vmem:[%s637] sm:$0xff] %v582
  %639 = vst [vmem:[%s637 + $0x8] sm:$0xff] %v583
  %640 = vst [vmem:[%s637 + $0x10] sm:$0xff] %v594
  %641 = vst [vmem:[%s637 + $0x18] sm:$0xff] %v595
  %642 = vst [vmem:[%s637 + $0x20] sm:$0xf] %v606
  %643 = vst [vmem:[%s637 + $0x28] sm:$0xf] %v607
  %s644 = scalar_lea.vmem %s3, 240
  %645 = vst [vmem:[%s644] sm:$0xff] %v584
  %646 = vst [vmem:[%s644 + $0x8] sm:$0xff] %v585
  %647 = vst [vmem:[%s644 + $0x10] sm:$0xff] %v596
  %648 = vst [vmem:[%s644 + $0x18] sm:$0xff] %v597
  %649 = vst [vmem:[%s644 + $0x20] sm:$0xf] %v608
  %650 = vst [vmem:[%s644 + $0x28] sm:$0xf] %v609
  // Predicated region
  $region14: #{conv_transpose_leaky.1} parent=0 // pred_check
    _
  $region15: #{conv_transpose_leaky.1} parent=0 // pred_check_branch
    %652 = sbr.rel (0) target = $region17
  $region16: #{conv_transpose_leaky.1} parent=0 // pred_region
    _
  $region17: #{conv_transpose_leaky.1} parent=0 // pred_fallthru
    _
  // Predicated region
  $region18: #{conv_transpose_leaky.1} parent=0 // pred_check
    _
  $region19: #{conv_transpose_leaky.1} parent=0 // pred_check_branch
    %654 = sbr.rel (0) target = $region21
  $region20: #{conv_transpose_leaky.1} parent=0 // pred_region
    _
  $region21: #{conv_transpose_leaky.1} parent=0 // pred_fallthru
    _

</llo_original>
